<compile_context>
chip_gen: v6e
topology: v6e:2x2x1
jax: 0.10.0
libtpu: 0.0.40
codegen_flags: <defaults>
</compile_context>

<pallas_src>
import functools

import jax
import jax.numpy as jnp
from jax import lax
from jax.experimental import pallas as pl
from jax.experimental.pallas import tpu as pltpu

EPS = 1e-5


def _round_up(a, b):
    return ((a + b - 1) // b) * b


def _conv_stats_kernel(xcol_ref, w_ref, conv_ref, sum_ref, sumsq_ref):
    """One (C_out, K*C_in) @ (K*C_in, TL) MXU matmul + fused per-channel stats."""
    x = xcol_ref[0]                                             # (K*C_in, TL)
    w = w_ref[...]                                              # (C_out, K*C_in)
    y = jnp.dot(w, x, preferred_element_type=jnp.float32)       # (C_out, TL)
    conv_ref[0] = y
    # Per-channel partial statistics for this (n, L-tile) block.  Padded tail
    # columns of xcol are zero, so they contribute 0 to both sums.
    sum_ref[...] = jnp.sum(y, axis=-1, keepdims=True)[None, None]        # (1,1,C_out,1)
    sumsq_ref[...] = jnp.sum(y * y, axis=-1, keepdims=True)[None, None]  # (1,1,C_out,1)


def _bn_apply_kernel(conv_ref, scale_ref, shift_ref, out_ref):
    """out = conv * scale + shift  (per-channel scale/shift precomputed in wrapper)."""
    out_ref[...] = conv_ref[...] * scale_ref[...] + shift_ref[...]


def tconv1d_batchnorm(x_ncl, weight, gamma, beta, *, stride=1, padding=0,
                      dilation=1, groups=1):
    """x_ncl: (N, C_in, L_in); weight: (C_in, C_out, K) (PyTorch ConvTranspose1d layout)."""
    # TODO(synk): grouped transposed conv (groups > 1) not implemented.
    assert groups == 1
    N, C_in, L_in = x_ncl.shape
    C_in_w, C_out, K = weight.shape
    assert C_in_w == C_in

    L_out = (L_in - 1) * stride - 2 * padding + dilation * (K - 1) + 1
    pad_eff = dilation * (K - 1) - padding
    assert pad_eff >= 0, "padding must be <= dilation*(kernel_size-1)"

    # Kept f32 to match PyTorch forward numerics exactly.
    # TODO(synk): optional bf16 inputs (f32 MXU accumulate) for v6e/v7x HBM savings.
    x_f32 = x_ncl.astype(jnp.float32)
    w_f32 = weight.astype(jnp.float32)

    # ---- wrapper glue (plain JAX, NCL layout kept throughout) ----
    # Equivalent-conv formulation: zero-insert by `stride`, pad by pad_eff, flip taps.
    # TODO(synk): polyphase decomposition would avoid DMAing/multiplying the inserted
    # zeros (~stride x savings); kept the simpler zero-insert im2col for robustness.
    Lz = (L_in - 1) * stride + 1
    xz = jnp.zeros((N, C_in, Lz), jnp.float32).at[:, :, ::stride].set(x_f32)
    xpad = jnp.pad(xz, ((0, 0), (0, 0), (pad_eff, pad_eff)))    # (N, C_in, L_out + dilation*(K-1))

    # Lane-dense padded output length and L-tile size (target ~512-wide tiles).
    TL = min(512, _round_up(L_out, 128))
    LT = _round_up(L_out, TL)
    num_lt = LT // TL
    KC = K * C_in

    # im2col: xcol[n, k*C_in + ci, lo] = xpad[n, ci, lo + k*dilation]
    cols = [xpad[:, :, k * dilation:k * dilation + L_out] for k in range(K)]
    xcol = jnp.concatenate(cols, axis=1)                        # (N, K*C_in, L_out)
    xcol = jnp.pad(xcol, ((0, 0), (0, 0), (0, LT - L_out)))     # (N, K*C_in, LT)

    # Flipped-tap weight matrix: wmat[co, k*C_in + ci] = weight[ci, co, K-1-k]
    wmat = jnp.transpose(w_f32[:, :, ::-1], (2, 0, 1)).reshape(KC, C_out).T  # (C_out, KC)

    dimsem = pltpu.CompilerParams(dimension_semantics=("parallel", "parallel"))

    # ---- kernel 1: transposed conv + fused per-tile BN statistics ----
    conv_pad, sum_part, sumsq_part = pl.pallas_call(
        _conv_stats_kernel,
        out_shape=[
            jax.ShapeDtypeStruct((N, C_out, LT), jnp.float32),
            jax.ShapeDtypeStruct((N, num_lt, C_out, 1), jnp.float32),
            jax.ShapeDtypeStruct((N, num_lt, C_out, 1), jnp.float32),
        ],
        grid=(N, num_lt),
        in_specs=[
            pl.BlockSpec((1, KC, TL), lambda n, l: (n, 0, l)),
            pl.BlockSpec((C_out, KC), lambda n, l: (0, 0)),
        ],
        out_specs=[
            pl.BlockSpec((1, C_out, TL), lambda n, l: (n, 0, l)),
            pl.BlockSpec((1, 1, C_out, 1), lambda n, l: (n, l, 0, 0)),
            pl.BlockSpec((1, 1, C_out, 1), lambda n, l: (n, l, 0, 0)),
        ],
        compiler_params=dimsem,
    )(xcol, wmat)

    # ---- tiny per-channel reduction + BN affine folding (plain JAX) ----
    count = jnp.float32(N * L_out)
    ch_sum = jnp.sum(sum_part, axis=(0, 1))[:, 0]               # (C_out,)
    ch_sumsq = jnp.sum(sumsq_part, axis=(0, 1))[:, 0]           # (C_out,)
    mean = ch_sum / count
    # E[x^2] - E[x]^2 in f32; clamp tiny negatives from cancellation.
    var = jnp.maximum(ch_sumsq / count - mean * mean, 0.0)
    inv = lax.rsqrt(var + EPS)
    g = gamma.astype(jnp.float32)
    b = beta.astype(jnp.float32)
    scale = (g * inv).reshape(1, C_out, 1)
    shift = (b - mean * g * inv).reshape(1, C_out, 1)

    # ---- kernel 2: normalize (one fused multiply-add per element, lane-dense) ----
    out_pad = pl.pallas_call(
        _bn_apply_kernel,
        out_shape=jax.ShapeDtypeStruct((N, C_out, LT), jnp.float32),
        grid=(N, num_lt),
        in_specs=[
            pl.BlockSpec((1, C_out, TL), lambda n, l: (n, 0, l)),
            pl.BlockSpec((1, C_out, 1), lambda n, l: (0, 0, 0)),
            pl.BlockSpec((1, C_out, 1), lambda n, l: (0, 0, 0)),
        ],
        out_specs=pl.BlockSpec((1, C_out, TL), lambda n, l: (n, 0, l)),
        compiler_params=dimsem,
    )(conv_pad, scale, shift)

    return out_pad[:, :, :L_out]                                # (N, C_out, L_out)


def _reference(x_ncl, weight, gamma, beta, *, stride, padding, dilation):
    """Independent plain-JAX reference (direct scatter formulation of ConvTranspose1d)."""
    N, C_in, L_in = x_ncl.shape
    _, C_out, K = weight.shape
    L_out = (L_in - 1) * stride - 2 * padding + dilation * (K - 1) + 1
    y = jnp.zeros((N, C_out, L_out), jnp.float32)
    for li in range(L_in):
        for k in range(K):
            lo = li * stride - padding + k * dilation
            if 0 <= lo < L_out:
                contrib = jnp.einsum('ni,io->no', x_ncl[:, :, li], weight[:, :, k])
                y = y.at[:, :, lo].add(contrib)
    mean = y.mean(axis=(0, 2), keepdims=True)
    var = ((y - mean) ** 2).mean(axis=(0, 2), keepdims=True)
    yn = (y - mean) / jnp.sqrt(var + EPS)
    return yn * gamma[None, :, None] + beta[None, :, None]


if __name__ == "__main__":
    # Module config: Tconv1DBatchNorm(in_channels=4, out_channels=8, kernel_size=3,
    #                                 stride=2, padding=1, dilation=1, groups=1)
    N, C_in, C_out, L_in, K = 2, 4, 8, 16, 3
    stride, padding, dilation = 2, 1, 1

    key = jax.random.PRNGKey(0)
    kx, kw = jax.random.split(key)
    x = jax.random.normal(kx, (N, C_in, L_in), dtype=jnp.float32)
    # ConvTranspose1d weight layout: (C_in, C_out/groups, K); deterministic init.
    w = 0.1 * jax.random.normal(kw, (C_in, C_out, K), dtype=jnp.float32)
    gamma = jnp.ones((C_out,), jnp.float32)   # BatchNorm1d default weight
    beta = jnp.zeros((C_out,), jnp.float32)   # BatchNorm1d default bias

    fn = jax.jit(functools.partial(tconv1d_batchnorm, stride=stride,
                                   padding=padding, dilation=dilation, groups=1))
    out = jax.block_until_ready(fn(x, w, gamma, beta))

    ref = _reference(x, w, gamma, beta, stride=stride, padding=padding,
                     dilation=dilation)
    L_out = (L_in - 1) * stride - 2 * padding + dilation * (K - 1) + 1
    assert out.shape == (N, C_out, L_out)
    assert jnp.allclose(out, ref, rtol=1e-3, atol=1e-3), "mismatch vs reference"

    print("KERNEL_OK")
</pallas_src>

<mosaic_0001>
module attributes {stable_mosaic.version = 11 : i64} {
  func.func @_conv_stats_kernel(%arg0: i32, %arg1: i32, %arg2: memref<1x12x128xf32, #tpu.memory_space<vmem>>, %arg3: memref<8x12xf32, #tpu.memory_space<vmem>>, %arg4: memref<1x8x128xf32, #tpu.memory_space<vmem>>, %arg5: memref<1x1x8x1xf32, #tpu.memory_space<vmem>>, %arg6: memref<1x1x8x1xf32, #tpu.memory_space<vmem>>) attributes {dimension_semantics = [#tpu.dimension_semantics<parallel>, #tpu.dimension_semantics<parallel>], iteration_bounds = array<i64: 2, 1>, scalar_prefetch = 0 : i64, scratch_operands = 0 : i64, tpu.core_type = #tpu.core_type<tc>, window_params = [{transform_indices = @transform_0, window_bounds = array<i64: 1, 12, 128>}, {pipeline_mode = #tpu.pipeline_mode<synchronous>, transform_indices = @transform_1, window_bounds = array<i64: 8, 12>}, {transform_indices = @transform_2, window_bounds = array<i64: 1, 8, 128>}, {transform_indices = @transform_3, window_bounds = array<i64: 1, 1, 8, 1>}, {transform_indices = @transform_4, window_bounds = array<i64: 1, 1, 8, 1>}]} {
    %c0 = arith.constant 0 : index
    %c0_0 = arith.constant 0 : index
    %c0_1 = arith.constant 0 : index
    %0 = vector.load %arg2[%c0, %c0_0, %c0_1] : memref<1x12x128xf32, #tpu.memory_space<vmem>>, vector<1x12x128xf32>
    %1 = vector.shape_cast %0 : vector<1x12x128xf32> to vector<12x128xf32>
    %c0_2 = arith.constant 0 : index
    %c0_3 = arith.constant 0 : index
    %2 = vector.load %arg3[%c0_2, %c0_3] : memref<8x12xf32, #tpu.memory_space<vmem>>, vector<8x12xf32>
    %cst = arith.constant dense<0.000000e+00> : vector<8x128xf32>
    %3 = tpu.matmul %2, %1, %cst {dimension_numbers = #tpu.dot_dimension_numbers<[1], [0], [0], [1], [0, 0, 1, 1], [], []>} : vector<8x12xf32>, vector<12x128xf32>, vector<8x128xf32> -> vector<8x128xf32>
    %c0_4 = arith.constant 0 : index
    %c0_5 = arith.constant 0 : index
    %c0_6 = arith.constant 0 : index
    %4 = vector.load %arg4[%c0_4, %c0_5, %c0_6] : memref<1x8x128xf32, #tpu.memory_space<vmem>>, vector<1x8x128xf32>
    %5 = vector.shape_cast %4 : vector<1x8x128xf32> to vector<8x128xf32>
    %6 = vector.shape_cast %3 : vector<8x128xf32> to vector<1x8x128xf32>
    tpu.vector_store %arg4[%c0_4, %c0_5, %c0_6], %6 {strides = array<i32>} : memref<1x8x128xf32, #tpu.memory_space<vmem>>, vector<1x8x128xf32>,
    %cst_7 = arith.constant dense<0.000000e+00> : vector<8xf32>
    %7 = vector.multi_reduction <add>, %3, %cst_7 [1] : vector<8x128xf32> to vector<8xf32>
    %8 = vector.shape_cast %7 : vector<8xf32> to vector<8x1xf32>
    %9 = vector.shape_cast %8 : vector<8x1xf32> to vector<1x1x8x1xf32>
    %c0_8 = arith.constant 0 : index
    %c0_9 = arith.constant 0 : index
    %c0_10 = arith.constant 0 : index
    %c0_11 = arith.constant 0 : index
    %10 = vector.load %arg5[%c0_8, %c0_9, %c0_10, %c0_11] : memref<1x1x8x1xf32, #tpu.memory_space<vmem>>, vector<1x1x8x1xf32>
    tpu.vector_store %arg5[%c0_8, %c0_9, %c0_10, %c0_11], %9 {strides = array<i32>} : memref<1x1x8x1xf32, #tpu.memory_space<vmem>>, vector<1x1x8x1xf32>,
    %11 = arith.mulf %3, %3 : vector<8x128xf32>
    %cst_12 = arith.constant dense<0.000000e+00> : vector<8xf32>
    %12 = vector.multi_reduction <add>, %11, %cst_12 [1] : vector<8x128xf32> to vector<8xf32>
    %13 = vector.shape_cast %12 : vector<8xf32> to vector<8x1xf32>
    %14 = vector.shape_cast %13 : vector<8x1xf32> to vector<1x1x8x1xf32>
    %c0_13 = arith.constant 0 : index
    %c0_14 = arith.constant 0 : index
    %c0_15 = arith.constant 0 : index
    %c0_16 = arith.constant 0 : index
    %15 = vector.load %arg6[%c0_13, %c0_14, %c0_15, %c0_16] : memref<1x1x8x1xf32, #tpu.memory_space<vmem>>, vector<1x1x8x1xf32>
    tpu.vector_store %arg6[%c0_13, %c0_14, %c0_15, %c0_16], %14 {strides = array<i32>} : memref<1x1x8x1xf32, #tpu.memory_space<vmem>>, vector<1x1x8x1xf32>,
    return
  }
  func.func @transform_0(%arg0: i32, %arg1: i32) -> (i32, i32, i32) {
    %c0_i32 = arith.constant 0 : i32
    %c0_i32_0 = arith.constant 0 : i32
    return %arg0, %c0_i32, %arg1 : i32, i32, i32
  }
  func.func @transform_1(%arg0: i32, %arg1: i32) -> (i32, i32) {
    %c0_i32 = arith.constant 0 : i32
    %c0_i32_0 = arith.constant 0 : i32
    %c0_i32_1 = arith.constant 0 : i32
    return %c0_i32, %c0_i32_0 : i32, i32
  }
  func.func @transform_2(%arg0: i32, %arg1: i32) -> (i32, i32, i32) {
    %c0_i32 = arith.constant 0 : i32
    %c0_i32_0 = arith.constant 0 : i32
    return %arg0, %c0_i32, %arg1 : i32, i32, i32
  }
  func.func @transform_3(%arg0: i32, %arg1: i32) -> (i32, i32, i32, i32) {
    %c0_i32 = arith.constant 0 : i32
    %c0_i32_0 = arith.constant 0 : i32
    %c0_i32_1 = arith.constant 0 : i32
    return %arg0, %arg1, %c0_i32, %c0_i32_0 : i32, i32, i32, i32
  }
  func.func @transform_4(%arg0: i32, %arg1: i32) -> (i32, i32, i32, i32) {
    %c0_i32 = arith.constant 0 : i32
    %c0_i32_0 = arith.constant 0 : i32
    %c0_i32_1 = arith.constant 0 : i32
    return %arg0, %arg1, %c0_i32, %c0_i32_0 : i32, i32, i32, i32
  }
}

module attributes {stable_mosaic.version = 11 : i64} {
  func.func @_bn_apply_kernel(%arg0: i32, %arg1: i32, %arg2: memref<1x8x128xf32, #tpu.memory_space<vmem>>, %arg3: memref<1x8x1xf32, #tpu.memory_space<vmem>>, %arg4: memref<1x8x1xf32, #tpu.memory_space<vmem>>, %arg5: memref<1x8x128xf32, #tpu.memory_space<vmem>>) attributes {dimension_semantics = [#tpu.dimension_semantics<parallel>, #tpu.dimension_semantics<parallel>], iteration_bounds = array<i64: 2, 1>, scalar_prefetch = 0 : i64, scratch_operands = 0 : i64, tpu.core_type = #tpu.core_type<tc>, window_params = [{transform_indices = @transform_0, window_bounds = array<i64: 1, 8, 128>}, {pipeline_mode = #tpu.pipeline_mode<synchronous>, transform_indices = @transform_1, window_bounds = array<i64: 1, 8, 1>}, {pipeline_mode = #tpu.pipeline_mode<synchronous>, transform_indices = @transform_2, window_bounds = array<i64: 1, 8, 1>}, {transform_indices = @transform_3, window_bounds = array<i64: 1, 8, 128>}]} {
    %c0 = arith.constant 0 : index
    %c0_0 = arith.constant 0 : index
    %c0_1 = arith.constant 0 : index
    %0 = vector.load %arg2[%c0, %c0_0, %c0_1] : memref<1x8x128xf32, #tpu.memory_space<vmem>>, vector<1x8x128xf32>
    %c0_2 = arith.constant 0 : index
    %c0_3 = arith.constant 0 : index
    %c0_4 = arith.constant 0 : index
    %1 = vector.load %arg3[%c0_2, %c0_3, %c0_4] : memref<1x8x1xf32, #tpu.memory_space<vmem>>, vector<1x8x1xf32>
    %2 = vector.broadcast %1 : vector<1x8x1xf32> to vector<1x8x128xf32>
    %3 = arith.mulf %0, %2 : vector<1x8x128xf32>
    %c0_5 = arith.constant 0 : index
    %c0_6 = arith.constant 0 : index
    %c0_7 = arith.constant 0 : index
    %4 = vector.load %arg4[%c0_5, %c0_6, %c0_7] : memref<1x8x1xf32, #tpu.memory_space<vmem>>, vector<1x8x1xf32>
    %5 = vector.broadcast %4 : vector<1x8x1xf32> to vector<1x8x128xf32>
    %6 = arith.addf %3, %5 : vector<1x8x128xf32>
    %c0_8 = arith.constant 0 : index
    %c0_9 = arith.constant 0 : index
    %c0_10 = arith.constant 0 : index
    %7 = vector.load %arg5[%c0_8, %c0_9, %c0_10] : memref<1x8x128xf32, #tpu.memory_space<vmem>>, vector<1x8x128xf32>
    tpu.vector_store %arg5[%c0_8, %c0_9, %c0_10], %6 {strides = array<i32>} : memref<1x8x128xf32, #tpu.memory_space<vmem>>, vector<1x8x128xf32>,
    return
  }
  func.func @transform_0(%arg0: i32, %arg1: i32) -> (i32, i32, i32) {
    %c0_i32 = arith.constant 0 : i32
    %c0_i32_0 = arith.constant 0 : i32
    return %arg0, %c0_i32, %arg1 : i32, i32, i32
  }
  func.func @transform_1(%arg0: i32, %arg1: i32) -> (i32, i32, i32) {
    %c0_i32 = arith.constant 0 : i32
    %c0_i32_0 = arith.constant 0 : i32
    %c0_i32_1 = arith.constant 0 : i32
    %c0_i32_2 = arith.constant 0 : i32
    return %c0_i32, %c0_i32_0, %c0_i32_1 : i32, i32, i32
  }
  func.func @transform_2(%arg0: i32, %arg1: i32) -> (i32, i32, i32) {
    %c0_i32 = arith.constant 0 : i32
    %c0_i32_0 = arith.constant 0 : i32
    %c0_i32_1 = arith.constant 0 : i32
    %c0_i32_2 = arith.constant 0 : i32
    return %c0_i32, %c0_i32_0, %c0_i32_1 : i32, i32, i32
  }
  func.func @transform_3(%arg0: i32, %arg1: i32) -> (i32, i32, i32) {
    %c0_i32 = arith.constant 0 : i32
    %c0_i32_0 = arith.constant 0 : i32
    return %arg0, %c0_i32, %arg1 : i32, i32, i32
  }
}

</mosaic_0001>

<llo_original>
// kernel: tconv1d_batchnorm.2
$region0: #{tconv1d_batchnorm.2}
  #allocation0 [shape = 'u32[]', space=smem, size = 0x4, offset = 0x4, fixed_abs, tag = 'smem constant byte address 0x4 - core index']
  #allocation1 [shape = 'u32[144,128]{1,0:T(1,128)}', space=vmem, size = 0x12000, scoped, tag = 'internal scratch']
  %s0 = inlined_call_operand.vmem [shape: f32[2,12,128], index: 0, kind: input, shape index: {}]
  %s1 = inlined_call_operand.vmem [shape: f32[8,12], index: 1, kind: input, shape index: {}]
  %s2 = inlined_call_operand.vmem [shape: f32[2,8,128], index: 2, kind: output, shape index: {0}]
  %s3 = inlined_call_operand.vmem [shape: f32[2,1,8,1], index: 3, kind: output, shape index: {1}]
  %s4 = inlined_call_operand.vmem [shape: f32[2,1,8,1], index: 4, kind: output, shape index: {2}]
  %5 = xla_tuple %s2, %s3, %s4
  %s6 = sld [smem:[#allocation0]]
  $region57: #{tconv1d_batchnorm.2} parent=0
    _
  %s8 = ssub.s32 1, %s6
  %s9 = scalar_select 0, %s8, %s6
  loop: start=0, step=1, limit=4
  $region2: #{tconv1d_batchnorm.2} parent=0 // loop_pre_header
    _
  $region3: #{tconv1d_batchnorm.2} parent=0 // loop_header
    %s11 = sphi 0, %s15
    %p12 = scmp.ge.s32.totalorder %s11, 4
    %s18 = sphi 0, %s30
    %s19 = sphi 0, %s26
    %s20 = sphi 0, %s18
    %s21 = sphi 0, %s19
    %s22 = sphi 0, %s20
    %s23 = sphi 0, %s21
    %s35 = sphi 0, %s37
    %s38 = sphi 0, %s35
    %s39 = sphi 0, %s38
    %s55 = sphi 0, %s39
    %s59 = sphi 0, %s59
    %s61 = sphi 0, %s59
    %s62 = sphi 0, %s61
    %s76 = sphi 0, %s62
    %s84 = sphi 0, %s86
    %s87 = sphi 0, %s84
    %s88 = sphi 0, %s87
    %s104 = sphi 0, %s88
    %s112 = sphi 0, %s114
    %s115 = sphi 0, %s112
    %s116 = sphi 0, %s115
    %s132 = sphi 0, %s116
    %s140 = sphi 0, %s142
    %s143 = sphi 0, %s140
    %s144 = sphi 0, %s143
    %s160 = sphi 0, %s144
  $region4: #{tconv1d_batchnorm.2} parent=0 // loop_header_branch
    %14 = sbr.rel (%p12) target = $region8
  $region5: #{tconv1d_batchnorm.2} parent=0 // loop_body
    %s16 = ssub.s32 %s11, 1
    %s17 = ssub.s32 %s11, 2
    %s24 = sadd.s32 1, %s19
    %p25 = scmp.ge.s32.totalorder %s24, 1
    %s26 = scalar_select %p25, 0, %s24
    %s27 = sadd.s32 1, %s18
    %s28 = scalar_select %p25, %s27, %s18
    %p29 = scmp.ge.s32.totalorder %s28, 2
    %s30 = scalar_select %p29, 0, %s28
    %s31 = ssub.s32 %s18, %s30
    %s32 = ssub.s32 %s19, %s26
    %s33 = sor.u32 %s31, %s32
    %p34 = scmp.eq.s32.totalorder %s33, 0
    %s36 = sadd.s32 %s35, 1
    %s37 = scalar_select %p34, %s35, %s36
    %p40 = pneg %p34
    %p41 = scmp.eq.s32.totalorder %s11, 1
    %p42 = por %p40, %p41
    %p43 = scmp.ne.s32.totalorder %s35, %s38
    %p44 = scmp.eq.s32.totalorder %s11, 0
    %p45 = por %p43, %p44
    %p46 = scmp.ne.s32.totalorder %s35, %s38
    %p47 = scmp.eq.s32.totalorder %s16, 1
    %p48 = por %p46, %p47
    %p49 = scmp.ne.s32.totalorder %s38, %s39
    %p50 = scmp.eq.s32.totalorder %s16, 0
    %p51 = por %p49, %p50
    %p52 = scmp.ne.s32.totalorder %s38, %s39
    %p53 = scmp.eq.s32.totalorder %s17, 1
    %p54 = por %p52, %p53
    %p56 = scmp.ne.s32.totalorder %s39, %s55
    %p57 = scmp.eq.s32.totalorder %s17, 0
    %p58 = por %p56, %p57
    %s60 = sadd.s32 %s59, 1
    %p63 = scmp.eq.s32.totalorder %s11, 1
    %p64 = scmp.ne.s32.totalorder %s59, %s61
    %p65 = scmp.eq.s32.totalorder %s11, 0
    %p66 = por %p64, %p65
    %p67 = scmp.ne.s32.totalorder %s59, %s61
    %p68 = scmp.eq.s32.totalorder %s16, 1
    %p69 = por %p67, %p68
    %p70 = scmp.ne.s32.totalorder %s61, %s62
    %p71 = scmp.eq.s32.totalorder %s16, 0
    %p72 = por %p70, %p71
    %p73 = scmp.ne.s32.totalorder %s61, %s62
    %p74 = scmp.eq.s32.totalorder %s17, 1
    %p75 = por %p73, %p74
    %p77 = scmp.ne.s32.totalorder %s62, %s76
    %p78 = scmp.eq.s32.totalorder %s17, 0
    %p79 = por %p77, %p78
    %s80 = ssub.s32 %s18, %s30
    %s81 = ssub.s32 %s19, %s26
    %s82 = sor.u32 %s80, %s81
    %p83 = scmp.eq.s32.totalorder %s82, 0
    %s85 = sadd.s32 %s84, 1
    %s86 = scalar_select %p83, %s84, %s85
    %p89 = pneg %p83
    %p90 = scmp.eq.s32.totalorder %s11, 1
    %p91 = por %p89, %p90
    %p92 = scmp.ne.s32.totalorder %s84, %s87
    %p93 = scmp.eq.s32.totalorder %s11, 0
    %p94 = por %p92, %p93
    %p95 = scmp.ne.s32.totalorder %s84, %s87
    %p96 = scmp.eq.s32.totalorder %s16, 1
    %p97 = por %p95, %p96
    %p98 = scmp.ne.s32.totalorder %s87, %s88
    %p99 = scmp.eq.s32.totalorder %s16, 0
    %p100 = por %p98, %p99
    %p101 = scmp.ne.s32.totalorder %s87, %s88
    %p102 = scmp.eq.s32.totalorder %s17, 1
    %p103 = por %p101, %p102
    %p105 = scmp.ne.s32.totalorder %s88, %s104
    %p106 = scmp.eq.s32.totalorder %s17, 0
    %p107 = por %p105, %p106
    %s108 = ssub.s32 %s18, %s30
    %s109 = ssub.s32 %s19, %s26
    %s110 = sor.u32 %s108, %s109
    %p111 = scmp.eq.s32.totalorder %s110, 0
    %s113 = sadd.s32 %s112, 1
    %s114 = scalar_select %p111, %s112, %s113
    %p117 = pneg %p111
    %p118 = scmp.eq.s32.totalorder %s11, 1
    %p119 = por %p117, %p118
    %p120 = scmp.ne.s32.totalorder %s112, %s115
    %p121 = scmp.eq.s32.totalorder %s11, 0
    %p122 = por %p120, %p121
    %p123 = scmp.ne.s32.totalorder %s112, %s115
    %p124 = scmp.eq.s32.totalorder %s16, 1
    %p125 = por %p123, %p124
    %p126 = scmp.ne.s32.totalorder %s115, %s116
    %p127 = scmp.eq.s32.totalorder %s16, 0
    %p128 = por %p126, %p127
    %p129 = scmp.ne.s32.totalorder %s115, %s116
    %p130 = scmp.eq.s32.totalorder %s17, 1
    %p131 = por %p129, %p130
    %p133 = scmp.ne.s32.totalorder %s116, %s132
    %p134 = scmp.eq.s32.totalorder %s17, 0
    %p135 = por %p133, %p134
    %s136 = ssub.s32 %s18, %s30
    %s137 = ssub.s32 %s19, %s26
    %s138 = sor.u32 %s136, %s137
    %p139 = scmp.eq.s32.totalorder %s138, 0
    %s141 = sadd.s32 %s140, 1
    %s142 = scalar_select %p139, %s140, %s141
    %p145 = pneg %p139
    %p146 = scmp.eq.s32.totalorder %s11, 1
    %p147 = por %p145, %p146
    %p148 = scmp.ne.s32.totalorder %s140, %s143
    %p149 = scmp.eq.s32.totalorder %s11, 0
    %p150 = por %p148, %p149
    %p151 = scmp.ne.s32.totalorder %s140, %s143
    %p152 = scmp.eq.s32.totalorder %s16, 1
    %p153 = por %p151, %p152
    %p154 = scmp.ne.s32.totalorder %s143, %s144
    %p155 = scmp.eq.s32.totalorder %s16, 0
    %p156 = por %p154, %p155
    %p157 = scmp.ne.s32.totalorder %s143, %s144
    %p158 = scmp.eq.s32.totalorder %s17, 1
    %p159 = por %p157, %p158
    %p161 = scmp.ne.s32.totalorder %s144, %s160
    %p162 = scmp.eq.s32.totalorder %s17, 0
    %p163 = por %p161, %p162
    %p164 = scmp.le.s32.totalorder 1, %s11
    %p165 = scmp.lt.s32.totalorder %s11, 3
    %p166 = pnand %p164, %p165
    %p167 = pneg %p166
    // Predicated region
    $region9: #{tconv1d_batchnorm.2} parent=5 // pred_check
      _
    $region10: #{tconv1d_batchnorm.2} parent=5 // pred_check_branch
      %169 = sbr.rel (%p166) target = $region12
    $region11: #{tconv1d_batchnorm.2} parent=5 // pred_region
      %s170 = ssub.s32 %s11, 1
      // Predicated region
      $region13: #{tconv1d_batchnorm.2} parent=11 // pred_check
        %p171 = pneg %p72
      $region14: #{tconv1d_batchnorm.2} parent=11 // pred_check_branch
        %173 = sbr.rel (%p171) target = $region16
      $region15: #{tconv1d_batchnorm.2} parent=11 // pred_region
        _
      $region16: #{tconv1d_batchnorm.2} parent=11 // pred_fallthru
        _
    $region12: #{tconv1d_batchnorm.2} parent=5 // pred_fallthru
      _
    %p174 = scmp.lt.s32.totalorder %s11, 2
    // Predicated region
    $region17: #{tconv1d_batchnorm.2} parent=5 // pred_check
      %p175 = pneg %p174
    $region18: #{tconv1d_batchnorm.2} parent=5 // pred_check_branch
      %177 = sbr.rel (%p175) target = $region20
    $region19: #{tconv1d_batchnorm.2} parent=5 // pred_region
      // Predicated region
      $region21: #{tconv1d_batchnorm.2} parent=19 // pred_check
        %p178 = pneg %p45
      $region22: #{tconv1d_batchnorm.2} parent=19 // pred_check_branch
        %180 = sbr.rel (%p178) target = $region24
      $region23: #{tconv1d_batchnorm.2} parent=19 // pred_region
        %p181 = scmp.lt.s32.totalorder %s18, 1
        %s182 = scalar_select %p181, %s18, 1
        %p183 = scmp.lt.s32.totalorder %s19, 0
        %s184 = scalar_select %p183, %s19, 0
        %s185 = smul.addr %s182, 2
        %s186 = sadd.s32 %s184, %s185
        %s187 = smul.addr %s186, 8
        %s188 = scalar_lea.vmem %s0, %s187
      $region24: #{tconv1d_batchnorm.2} parent=19 // pred_fallthru
        _
    $region20: #{tconv1d_batchnorm.2} parent=5 // pred_fallthru
      _
    %p189 = scmp.le.s32.totalorder 1, %s11
    %p190 = scmp.lt.s32.totalorder %s11, 3
    %p191 = pnand %p189, %p190
    %p192 = pneg %p191
    // Predicated region
    $region25: #{tconv1d_batchnorm.2} parent=5 // pred_check
      _
    $region26: #{tconv1d_batchnorm.2} parent=5 // pred_check_branch
      %194 = sbr.rel (%p191) target = $region28
    $region27: #{tconv1d_batchnorm.2} parent=5 // pred_region
      %s195 = ssub.s32 %s11, 1
      %p196 = scmp.lt.s32.totalorder %s20, 1
      %s197 = scalar_select %p196, %s20, 1
      %p198 = scmp.lt.s32.totalorder %s21, 0
      %s199 = scalar_select %p198, %s21, 0
      %s200 = smul.addr %s197, 2
      %s201 = sadd.s32 %s199, %s200
      %s202 = smul.addr %s201, 8
      %s203 = scalar_lea.vmem %s0, %s202
      %p204 = pneg %p51
      %p205 = pneg %p48
      %p206 = pneg %p72
      %p207 = pneg %p69
      %p208 = pneg %p100
      %p209 = pneg %p97
      %p210 = scmp.lt.s32.totalorder %s20, 1
      %s211 = scalar_select %p210, %s20, 1
      %p212 = scmp.lt.s32.totalorder %s21, 0
      %s213 = scalar_select %p212, %s21, 0
      %s214 = sadd.s32 %s213, %s211
      %s215 = smul.addr %s214, 8
      %s216 = scalar_lea.vmem %s2, %s215
      %p217 = pneg %p128
      %p218 = pneg %p125
      %p219 = scmp.lt.s32.totalorder %s20, 1
      %s220 = scalar_select %p219, %s20, 1
      %p221 = scmp.lt.s32.totalorder %s21, 0
      %s222 = scalar_select %p221, %s21, 0
      %s223 = sadd.s32 %s222, %s220
      %s224 = smul.addr %s223, 8
      %s225 = scalar_lea.vmem %s3, %s224
      %p226 = pneg %p156
      %p227 = pneg %p153
      %p228 = scmp.lt.s32.totalorder %s20, 1
      %s229 = scalar_select %p228, %s20, 1
      %p230 = scmp.lt.s32.totalorder %s21, 0
      %s231 = scalar_select %p230, %s21, 0
      %s232 = sadd.s32 %s231, %s229
      %s233 = smul.addr %s232, 8
      %s234 = scalar_lea.vmem %s4, %s233
      %p235 = scmp.lt.s32.totalorder %s20, 1
      %s236 = scalar_select %p235, %s20, 1
      %p237 = scmp.lt.s32.totalorder %s21, 0
      %s238 = scalar_select %p237, %s21, 0
      %s239 = smul.addr %s236, 2
      %s240 = sadd.s32 %s238, %s239
      %s241 = smul.addr %s240, 8
      %s242 = scalar_lea.vmem %s0, %s241
      %p243 = scmp.lt.s32.totalorder %s20, 1
      %s244 = scalar_select %p243, %s20, 1
      %p245 = scmp.lt.s32.totalorder %s21, 0
      %s246 = scalar_select %p245, %s21, 0
      %s247 = sadd.s32 %s246, %s244
      %s248 = smul.addr %s247, 8
      %s249 = scalar_lea.vmem %s2, %s248
      %p250 = scmp.lt.s32.totalorder %s20, 1
      %s251 = scalar_select %p250, %s20, 1
      %p252 = scmp.lt.s32.totalorder %s21, 0
      %s253 = scalar_select %p252, %s21, 0
      %s254 = sadd.s32 %s253, %s251
      %s255 = smul.addr %s254, 8
      %s256 = scalar_lea.vmem %s3, %s255
      %p257 = scmp.lt.s32.totalorder %s20, 1
      %s258 = scalar_select %p257, %s20, 1
      %p259 = scmp.lt.s32.totalorder %s21, 0
      %s260 = scalar_select %p259, %s21, 0
      %s261 = sadd.s32 %s260, %s258
      %s262 = smul.addr %s261, 8
      %s263 = scalar_lea.vmem %s4, %s262
      %v264 = vld [vmem:[%s242] sm:$0xff]
      %v265 = vld [vmem:[%s242 + $0x8] sm:$0xf]
      %v266 = vld [vmem:[%s1] sm:$0xff]
      %vm267 = vcmask 97280
      %v269 = vsel %vm267, %v266, 0
      %vm271 = vcmask 1043456
      %v273 = vsel %vm271, %v265, 0
      %275 = vmatprep.subr.mxu0 0.0
      %276 = vmatpush1.msra.mxu0 0.0
      %277 = vmatprep.subr.mxu0 0.0
      %278 = vmatpush1.msra.mxu0 0.0
      %279 = vmatprep.subr.mxu0 0.0
      %280 = vmatpush1.msra.mxu0 0.0
      %281 = vmatprep.subr.mxu0 0.0
      %282 = vmatpush1.msra.mxu0 0.0
      %283 = vmatprep.subr.mxu0 0.0
      %284 = vmatpush1.msra.mxu0 0.0
      %285 = vmatprep.subr.mxu0 0.0
      %286 = vmatpush1.msra.mxu0 0.0
      %287 = vmatprep.subr.mxu0 0.0
      %288 = vmatpush1.msra.mxu0 0.0
      %289 = vmatprep.subr.mxu0 0.0
      %290 = vmatpush1.msra.mxu0 0.0
      %291 = vmatprep.subr.mxu0 0.0
      %292 = vmatpush1.msra.mxu0 0.0
      %293 = vmatprep.subr.mxu0 0.0
      %294 = vmatpush1.msra.mxu0 0.0
      %295 = vmatprep.subr.mxu0 0.0
      %296 = vmatpush1.msra.mxu0 0.0
      %297 = vmatprep.subr.mxu0 0.0
      %298 = vmatpush1.msra.mxu0 0.0
      %299 = vmatprep.subr.mxu0 0.0
      %300 = vmatpush1.msra.mxu0 0.0
      %301 = vmatprep.subr.mxu0 0.0
      %302 = vmatpush1.msra.mxu0 0.0
      %303 = vmatprep.subr.mxu0 0.0
      %304 = vmatpush1.msra.mxu0 %v273
      %305 = vmatprep.subr.mxu0 0.0
      %306 = vmatpush1.msra.mxu0 %v264
      %307 = vmatprep.subr.mxu0 0.0
      %308 = vmatpush2.msra.mxu0 0.0
      %309 = vmatprep.subr.mxu0 0.0
      %310 = vmatpush2.msra.mxu0 0.0
      %311 = vmatprep.subr.mxu0 0.0
      %312 = vmatpush2.msra.mxu0 0.0
      %313 = vmatprep.subr.mxu0 0.0
      %314 = vmatpush2.msra.mxu0 0.0
      %315 = vmatprep.subr.mxu0 0.0
      %316 = vmatpush2.msra.mxu0 0.0
      %317 = vmatprep.subr.mxu0 0.0
      %318 = vmatpush2.msra.mxu0 0.0
      %319 = vmatprep.subr.mxu0 0.0
      %320 = vmatpush2.msra.mxu0 0.0
      %321 = vmatprep.subr.mxu0 0.0
      %322 = vmatpush2.msra.mxu0 0.0
      %323 = vmatprep.subr.mxu0 0.0
      %324 = vmatpush2.msra.mxu0 0.0
      %325 = vmatprep.subr.mxu0 0.0
      %326 = vmatpush2.msra.mxu0 0.0
      %327 = vmatprep.subr.mxu0 0.0
      %328 = vmatpush2.msra.mxu0 0.0
      %329 = vmatprep.subr.mxu0 0.0
      %330 = vmatpush2.msra.mxu0 0.0
      %331 = vmatprep.subr.mxu0 0.0
      %332 = vmatpush2.msra.mxu0 0.0
      %333 = vmatprep.subr.mxu0 0.0
      %334 = vmatpush2.msra.mxu0 0.0
      %335 = vmatprep.subr.mxu0 0.0
      %336 = vmatpush2.msra.mxu0 0.0
      %337 = vmatprep.subr.mxu0 0.0
      %338 = vmatpush2.msra.mxu0 0.0
      %339 = vmatprep.mubr.f32.mxu0 0.0
      %340 = vmatmul.mubr.f32.gmra.mxu0 %v269
      %v341 = vpop.f32.mrf.mxu0
      %v342 = vadd.f32 0.0, %v341
      %v343 = vpop.f32.mrf.mxu0
      %344 = vdwg.mxu0
      %345 = vst [vmem:[%s249] sm:$0xff] %v342
      %346 = vadd.xlane.f32.xlu0 %v342
      %v347 = vpop.xlane.xlu0 %346
      %vm348 = vcmask 7168
      %349 = vst.msk [vmem:[%s256] sm:$0xff] %vm348, %v347
      %v350 = vmul.f32 %v342, %v342
      %351 = vadd.xlane.f32.xlu0 %v350
      %v352 = vpop.xlane.xlu0 %351
      %353 = vst.msk [vmem:[%s263] sm:$0xff] %vm348, %v352
      %p354 = scmp.lt.s32.totalorder %s20, 1
      %s355 = scalar_select %p354, %s20, 1
      %p356 = scmp.lt.s32.totalorder %s21, 0
      %s357 = scalar_select %p356, %s21, 0
      %s358 = sadd.s32 %s357, %s355
      %s359 = smul.addr %s358, 8
      %s360 = scalar_lea.vmem %s2, %s359
      %p361 = scmp.lt.s32.totalorder %s20, 1
      %s362 = scalar_select %p361, %s20, 1
      %p363 = scmp.lt.s32.totalorder %s21, 0
      %s364 = scalar_select %p363, %s21, 0
      %s365 = sadd.s32 %s364, %s362
      %s366 = smul.addr %s365, 8
      %s367 = scalar_lea.vmem %s3, %s366
      %p368 = scmp.lt.s32.totalorder %s20, 1
      %s369 = scalar_select %p368, %s20, 1
      %p370 = scmp.lt.s32.totalorder %s21, 0
      %s371 = scalar_select %p370, %s21, 0
      %s372 = sadd.s32 %s371, %s369
      %s373 = smul.addr %s372, 8
      %s374 = scalar_lea.vmem %s4, %s373
      // Predicated region
      $region29: #{tconv1d_batchnorm.2} parent=27 // pred_check
        %p375 = pneg %p97
      $region30: #{tconv1d_batchnorm.2} parent=27 // pred_check_branch
        %377 = sbr.rel (%p375) target = $region32
      $region31: #{tconv1d_batchnorm.2} parent=27 // pred_region
        _
      $region32: #{tconv1d_batchnorm.2} parent=27 // pred_fallthru
        _
      // Predicated region
      $region33: #{tconv1d_batchnorm.2} parent=27 // pred_check
        %p378 = pneg %p125
      $region34: #{tconv1d_batchnorm.2} parent=27 // pred_check_branch
        %380 = sbr.rel (%p378) target = $region36
      $region35: #{tconv1d_batchnorm.2} parent=27 // pred_region
        _
      $region36: #{tconv1d_batchnorm.2} parent=27 // pred_fallthru
        _
      // Predicated region
      $region37: #{tconv1d_batchnorm.2} parent=27 // pred_check
        %p381 = pneg %p153
      $region38: #{tconv1d_batchnorm.2} parent=27 // pred_check_branch
        %383 = sbr.rel (%p381) target = $region40
      $region39: #{tconv1d_batchnorm.2} parent=27 // pred_region
        _
      $region40: #{tconv1d_batchnorm.2} parent=27 // pred_fallthru
        _
    $region28: #{tconv1d_batchnorm.2} parent=5 // pred_fallthru
      _
    %p384 = scmp.le.s32.totalorder 2, %s11
    // Predicated region
    $region41: #{tconv1d_batchnorm.2} parent=5 // pred_check
      %p385 = pneg %p384
    $region42: #{tconv1d_batchnorm.2} parent=5 // pred_check_branch
      %387 = sbr.rel (%p385) target = $region44
    $region43: #{tconv1d_batchnorm.2} parent=5 // pred_region
      %s388 = ssub.s32 %s11, 2
      // Predicated region
      $region45: #{tconv1d_batchnorm.2} parent=43 // pred_check
        %p389 = pneg %p103
      $region46: #{tconv1d_batchnorm.2} parent=43 // pred_check_branch
        %391 = sbr.rel (%p389) target = $region48
      $region47: #{tconv1d_batchnorm.2} parent=43 // pred_region
        %p392 = scmp.lt.s32.totalorder %s22, 1
        %s393 = scalar_select %p392, %s22, 1
        %p394 = scmp.lt.s32.totalorder %s23, 0
        %s395 = scalar_select %p394, %s23, 0
        %s396 = sadd.s32 %s395, %s393
        %s397 = smul.addr %s396, 8
        %s398 = scalar_lea.vmem %s2, %s397
      $region48: #{tconv1d_batchnorm.2} parent=43 // pred_fallthru
        _
      // Predicated region
      $region49: #{tconv1d_batchnorm.2} parent=43 // pred_check
        %p399 = pneg %p131
      $region50: #{tconv1d_batchnorm.2} parent=43 // pred_check_branch
        %401 = sbr.rel (%p399) target = $region52
      $region51: #{tconv1d_batchnorm.2} parent=43 // pred_region
        %p402 = scmp.lt.s32.totalorder %s22, 1
        %s403 = scalar_select %p402, %s22, 1
        %p404 = scmp.lt.s32.totalorder %s23, 0
        %s405 = scalar_select %p404, %s23, 0
        %s406 = sadd.s32 %s405, %s403
        %s407 = smul.addr %s406, 8
        %s408 = scalar_lea.vmem %s3, %s407
      $region52: #{tconv1d_batchnorm.2} parent=43 // pred_fallthru
        _
      // Predicated region
      $region53: #{tconv1d_batchnorm.2} parent=43 // pred_check
        %p409 = pneg %p159
      $region54: #{tconv1d_batchnorm.2} parent=43 // pred_check_branch
        %411 = sbr.rel (%p409) target = $region56
      $region55: #{tconv1d_batchnorm.2} parent=43 // pred_region
        %p412 = scmp.lt.s32.totalorder %s22, 1
        %s413 = scalar_select %p412, %s22, 1
        %p414 = scmp.lt.s32.totalorder %s23, 0
        %s415 = scalar_select %p414, %s23, 0
        %s416 = sadd.s32 %s415, %s413
        %s417 = smul.addr %s416, 8
        %s418 = scalar_lea.vmem %s4, %s417
      $region56: #{tconv1d_batchnorm.2} parent=43 // pred_fallthru
        _
    $region44: #{tconv1d_batchnorm.2} parent=5 // pred_fallthru
      _
  $region6: #{tconv1d_batchnorm.2} parent=0 // loop_footer
    %s15 = sadd.s32 1, %s11
  $region7: #{tconv1d_batchnorm.2} parent=0 // loop_footer_branch
    %10 = sbr.rel target = $region3
  $region8: #{tconv1d_batchnorm.2} parent=0 // loop_exit
    _

// kernel: tconv1d_batchnorm.3
$region0: #{tconv1d_batchnorm.3}
  #allocation0 [shape = 'u32[]', space=smem, size = 0x4, offset = 0x4, fixed_abs, tag = 'smem constant byte address 0x4 - core index']
  #allocation1 [shape = 'u32[144,128]{1,0:T(1,128)}', space=vmem, size = 0x12000, scoped, tag = 'internal scratch']
  %s0 = inlined_call_operand.vmem [shape: f32[2,8,128], index: 0, kind: input, shape index: {}]
  %s1 = inlined_call_operand.vmem [shape: f32[1,8,1], index: 1, kind: input, shape index: {}]
  %s2 = inlined_call_operand.vmem [shape: f32[1,8,1], index: 2, kind: input, shape index: {}]
  %s3 = inlined_call_operand.hbm [shape: f32[2,8,128], index: 3, kind: output, shape index: {}]
  %s4 = sld [smem:[#allocation0]]
  $region45: #{tconv1d_batchnorm.3} parent=0
    _
  %s6 = ssub.s32 1, %s4
  %s7 = scalar_select 0, %s6, %s4
  $region1: #{tconv1d_batchnorm.3} parent=0
    #allocation2 [shape = 'u8[8192]{0}', space=vmem, size = 0x2000, scoped, tag = 'output window, operand 0']
    #allocation3 [shape = 's32[2]{0}', space=sflag, size = 0x8, scoped, tag = 'scoped memory for tconv1d_batchnorm.3']
    %8 = vsyncpa [#allocation3], 0
    %s9 = scalar_lea.sflag [#allocation3], 1
    %10 = vsyncpa %s9, 0
    loop: start=0, step=1, limit=4
    $region2: #{tconv1d_batchnorm.3} parent=1 // loop_pre_header
      _
    $region3: #{tconv1d_batchnorm.3} parent=1 // loop_header
      %s12 = sphi 0, %s16
      %p13 = scmp.ge.s32.totalorder %s12, 4
      %s19 = sphi 0, %s31
      %s20 = sphi 0, %s27
      %s21 = sphi 0, %s19
      %s22 = sphi 0, %s20
      %s23 = sphi 0, %s21
      %s24 = sphi 0, %s22
      %s36 = sphi 0, %s38
      %s39 = sphi 0, %s36
      %s40 = sphi 0, %s39
      %s56 = sphi 0, %s40
      %s60 = sphi 0, %s60
      %s62 = sphi 0, %s60
      %s63 = sphi 0, %s62
      %s77 = sphi 0, %s63
      %s81 = sphi 0, %s81
      %s83 = sphi 0, %s81
      %s84 = sphi 0, %s83
      %s98 = sphi 0, %s84
      %s106 = sphi 0, %s108
      %s109 = sphi 0, %s106
      %s110 = sphi 0, %s109
      %s126 = sphi 0, %s110
    $region4: #{tconv1d_batchnorm.3} parent=1 // loop_header_branch
      %15 = sbr.rel (%p13) target = $region8
    $region5: #{tconv1d_batchnorm.3} parent=1 // loop_body
      %s17 = ssub.s32 %s12, 1
      %s18 = ssub.s32 %s12, 2
      %s25 = sadd.s32 1, %s20
      %p26 = scmp.ge.s32.totalorder %s25, 1
      %s27 = scalar_select %p26, 0, %s25
      %s28 = sadd.s32 1, %s19
      %s29 = scalar_select %p26, %s28, %s19
      %p30 = scmp.ge.s32.totalorder %s29, 2
      %s31 = scalar_select %p30, 0, %s29
      %s32 = ssub.s32 %s19, %s31
      %s33 = ssub.s32 %s20, %s27
      %s34 = sor.u32 %s32, %s33
      %p35 = scmp.eq.s32.totalorder %s34, 0
      %s37 = sadd.s32 %s36, 1
      %s38 = scalar_select %p35, %s36, %s37
      %p41 = pneg %p35
      %p42 = scmp.eq.s32.totalorder %s12, 1
      %p43 = por %p41, %p42
      %p44 = scmp.ne.s32.totalorder %s36, %s39
      %p45 = scmp.eq.s32.totalorder %s12, 0
      %p46 = por %p44, %p45
      %p47 = scmp.ne.s32.totalorder %s36, %s39
      %p48 = scmp.eq.s32.totalorder %s17, 1
      %p49 = por %p47, %p48
      %p50 = scmp.ne.s32.totalorder %s39, %s40
      %p51 = scmp.eq.s32.totalorder %s17, 0
      %p52 = por %p50, %p51
      %p53 = scmp.ne.s32.totalorder %s39, %s40
      %p54 = scmp.eq.s32.totalorder %s18, 1
      %p55 = por %p53, %p54
      %p57 = scmp.ne.s32.totalorder %s40, %s56
      %p58 = scmp.eq.s32.totalorder %s18, 0
      %p59 = por %p57, %p58
      %s61 = sadd.s32 %s60, 1
      %p64 = scmp.eq.s32.totalorder %s12, 1
      %p65 = scmp.ne.s32.totalorder %s60, %s62
      %p66 = scmp.eq.s32.totalorder %s12, 0
      %p67 = por %p65, %p66
      %p68 = scmp.ne.s32.totalorder %s60, %s62
      %p69 = scmp.eq.s32.totalorder %s17, 1
      %p70 = por %p68, %p69
      %p71 = scmp.ne.s32.totalorder %s62, %s63
      %p72 = scmp.eq.s32.totalorder %s17, 0
      %p73 = por %p71, %p72
      %p74 = scmp.ne.s32.totalorder %s62, %s63
      %p75 = scmp.eq.s32.totalorder %s18, 1
      %p76 = por %p74, %p75
      %p78 = scmp.ne.s32.totalorder %s63, %s77
      %p79 = scmp.eq.s32.totalorder %s18, 0
      %p80 = por %p78, %p79
      %s82 = sadd.s32 %s81, 1
      %p85 = scmp.eq.s32.totalorder %s12, 1
      %p86 = scmp.ne.s32.totalorder %s81, %s83
      %p87 = scmp.eq.s32.totalorder %s12, 0
      %p88 = por %p86, %p87
      %p89 = scmp.ne.s32.totalorder %s81, %s83
      %p90 = scmp.eq.s32.totalorder %s17, 1
      %p91 = por %p89, %p90
      %p92 = scmp.ne.s32.totalorder %s83, %s84
      %p93 = scmp.eq.s32.totalorder %s17, 0
      %p94 = por %p92, %p93
      %p95 = scmp.ne.s32.totalorder %s83, %s84
      %p96 = scmp.eq.s32.totalorder %s18, 1
      %p97 = por %p95, %p96
      %p99 = scmp.ne.s32.totalorder %s84, %s98
      %p100 = scmp.eq.s32.totalorder %s18, 0
      %p101 = por %p99, %p100
      %s102 = ssub.s32 %s19, %s31
      %s103 = ssub.s32 %s20, %s27
      %s104 = sor.u32 %s102, %s103
      %p105 = scmp.eq.s32.totalorder %s104, 0
      %s107 = sadd.s32 %s106, 1
      %s108 = scalar_select %p105, %s106, %s107
      %p111 = pneg %p105
      %p112 = scmp.eq.s32.totalorder %s12, 1
      %p113 = por %p111, %p112
      %p114 = scmp.ne.s32.totalorder %s106, %s109
      %p115 = scmp.eq.s32.totalorder %s12, 0
      %p116 = por %p114, %p115
      %p117 = scmp.ne.s32.totalorder %s106, %s109
      %p118 = scmp.eq.s32.totalorder %s17, 1
      %p119 = por %p117, %p118
      %p120 = scmp.ne.s32.totalorder %s109, %s110
      %p121 = scmp.eq.s32.totalorder %s17, 0
      %p122 = por %p120, %p121
      %p123 = scmp.ne.s32.totalorder %s109, %s110
      %p124 = scmp.eq.s32.totalorder %s18, 1
      %p125 = por %p123, %p124
      %p127 = scmp.ne.s32.totalorder %s110, %s126
      %p128 = scmp.eq.s32.totalorder %s18, 0
      %p129 = por %p127, %p128
      %p130 = scmp.le.s32.totalorder 1, %s12
      %p131 = scmp.lt.s32.totalorder %s12, 3
      %p132 = pnand %p130, %p131
      %p133 = pneg %p132
      // Predicated region
      $region9: #{tconv1d_batchnorm.3} parent=5 // pred_check
        _
      $region10: #{tconv1d_batchnorm.3} parent=5 // pred_check_branch
        %135 = sbr.rel (%p132) target = $region12
      $region11: #{tconv1d_batchnorm.3} parent=5 // pred_region
        %s136 = ssub.s32 %s12, 1
        // Predicated region
        $region13: #{tconv1d_batchnorm.3} parent=11 // pred_check
          %p137 = pneg %p73
        $region14: #{tconv1d_batchnorm.3} parent=11 // pred_check_branch
          %139 = sbr.rel (%p137) target = $region16
        $region15: #{tconv1d_batchnorm.3} parent=11 // pred_region
          _
        $region16: #{tconv1d_batchnorm.3} parent=11 // pred_fallthru
          _
        // Predicated region
        $region17: #{tconv1d_batchnorm.3} parent=11 // pred_check
          %p140 = pneg %p94
        $region18: #{tconv1d_batchnorm.3} parent=11 // pred_check_branch
          %142 = sbr.rel (%p140) target = $region20
        $region19: #{tconv1d_batchnorm.3} parent=11 // pred_region
          _
        $region20: #{tconv1d_batchnorm.3} parent=11 // pred_fallthru
          _
      $region12: #{tconv1d_batchnorm.3} parent=5 // pred_fallthru
        _
      %p143 = scmp.lt.s32.totalorder %s12, 2
      // Predicated region
      $region21: #{tconv1d_batchnorm.3} parent=5 // pred_check
        %p144 = pneg %p143
      $region22: #{tconv1d_batchnorm.3} parent=5 // pred_check_branch
        %146 = sbr.rel (%p144) target = $region24
      $region23: #{tconv1d_batchnorm.3} parent=5 // pred_region
        // Predicated region
        $region25: #{tconv1d_batchnorm.3} parent=23 // pred_check
          %p147 = pneg %p46
        $region26: #{tconv1d_batchnorm.3} parent=23 // pred_check_branch
          %149 = sbr.rel (%p147) target = $region28
        $region27: #{tconv1d_batchnorm.3} parent=23 // pred_region
          %p150 = scmp.lt.s32.totalorder %s19, 1
          %s151 = scalar_select %p150, %s19, 1
          %p152 = scmp.lt.s32.totalorder %s20, 0
          %s153 = scalar_select %p152, %s20, 0
          %s154 = sadd.s32 %s153, %s151
          %s155 = smul.addr %s154, 8
          %s156 = scalar_lea.vmem %s0, %s155
        $region28: #{tconv1d_batchnorm.3} parent=23 // pred_fallthru
          _
      $region24: #{tconv1d_batchnorm.3} parent=5 // pred_fallthru
        _
      %p157 = scmp.le.s32.totalorder 1, %s12
      %p158 = scmp.lt.s32.totalorder %s12, 3
      %p159 = pnand %p157, %p158
      %p160 = pneg %p159
      // Predicated region
      $region29: #{tconv1d_batchnorm.3} parent=5 // pred_check
        _
      $region30: #{tconv1d_batchnorm.3} parent=5 // pred_check_branch
        %162 = sbr.rel (%p159) target = $region32
      $region31: #{tconv1d_batchnorm.3} parent=5 // pred_region
        %s163 = ssub.s32 %s12, 1
        %p164 = scmp.lt.s32.totalorder %s21, 1
        %s165 = scalar_select %p164, %s21, 1
        %p166 = scmp.lt.s32.totalorder %s22, 0
        %s167 = scalar_select %p166, %s22, 0
        %s168 = sadd.s32 %s167, %s165
        %s169 = smul.addr %s168, 8
        %s170 = scalar_lea.vmem %s0, %s169
        %p171 = pneg %p52
        %p172 = pneg %p49
        %p173 = pneg %p73
        %p174 = pneg %p70
        %p175 = pneg %p94
        %p176 = pneg %p91
        %p177 = pneg %p122
        %p178 = pneg %p119
        %s179 = sand.u32 %s109, 1
        %s180 = scalar_lea.sflag [#allocation3], %s179
        %s181 = sand.u32 %s109, 1
        %s182 = smul.addr %s181, 8
        %s183 = scalar_lea.vmem [#allocation2], %s182
        %p184 = scmp.lt.s32.totalorder %s21, 1
        %s185 = scalar_select %p184, %s21, 1
        %p186 = scmp.lt.s32.totalorder %s22, 0
        %s187 = scalar_select %p186, %s22, 0
        %s188 = sadd.s32 %s187, %s185
        %s189 = smul.addr %s188, 8
        %s190 = scalar_lea.vmem %s0, %s189
        %v191 = vld [vmem:[%s190] sm:$0xff]
        %v192 = vld [vmem:[%s1] sm:$0xff]
        %194 = vset.pattern.permute.xlu0 0
        %195 = vperm.xlu0 %194, %v192
        %v196 = vpop.permute.xlu0 %195
        %v198 = vmul.f32 %v191, %v196
        %v199 = vld [vmem:[%s2] sm:$0xff]
        %201 = vset.pattern.permute.xlu0 0
        %202 = vperm.xlu0 %201, %v199
        %v203 = vpop.permute.xlu0 %202
        %v205 = vadd.f32 %v198, %v203
        %206 = vst [vmem:[%s183] sm:$0xff] %v205
        %s207 = sand.u32 %s109, 1
        %s208 = scalar_lea.sflag [#allocation3], %s207
        %s209 = sand.u32 %s109, 1
        %s210 = smul.addr %s209, 8
        %s211 = scalar_lea.vmem [#allocation2], %s210
        // Predicated region
        $region33: #{tconv1d_batchnorm.3} parent=31 // pred_check
          %p212 = pneg %p119
        $region34: #{tconv1d_batchnorm.3} parent=31 // pred_check_branch
          %214 = sbr.rel (%p212) target = $region36
        $region35: #{tconv1d_batchnorm.3} parent=31 // pred_region
          %s216 = ssub.s32 128, 128
          %217 = vsyncadd %s208, %s216
          %s218 = sadd.s32 %s22, %s21
          %s219 = smul.addr %s218, 128
          %s220 = scalar_lea.hbm %s3, %s219
          %s222 = sshll.u32 %s211, 4
          %s223 = int_to_ptr.vmem [resolvable:$true] %s222
          %225 = dma.vmem_to_hbm [thread:$0]  %s223, 128, %s220, %s208
        $region36: #{tconv1d_batchnorm.3} parent=31 // pred_fallthru
          _
      $region32: #{tconv1d_batchnorm.3} parent=5 // pred_fallthru
        _
      %p226 = scmp.le.s32.totalorder 2, %s12
      // Predicated region
      $region37: #{tconv1d_batchnorm.3} parent=5 // pred_check
        %p227 = pneg %p226
      $region38: #{tconv1d_batchnorm.3} parent=5 // pred_check_branch
        %229 = sbr.rel (%p227) target = $region40
      $region39: #{tconv1d_batchnorm.3} parent=5 // pred_region
        %s230 = ssub.s32 %s12, 2
        // Predicated region
        $region41: #{tconv1d_batchnorm.3} parent=39 // pred_check
          %p231 = pneg %p125
        $region42: #{tconv1d_batchnorm.3} parent=39 // pred_check_branch
          %233 = sbr.rel (%p231) target = $region44
        $region43: #{tconv1d_batchnorm.3} parent=39 // pred_region
          %s234 = sand.u32 %s110, 1
          %s235 = scalar_lea.sflag [#allocation3], %s234
          %s236 = sand.u32 %s110, 1
          %s237 = smul.addr %s236, 8
          %s238 = scalar_lea.vmem [#allocation2], %s237
          %239 = dma.done %s235, 128
        $region44: #{tconv1d_batchnorm.3} parent=39 // pred_fallthru
          _
      $region40: #{tconv1d_batchnorm.3} parent=5 // pred_fallthru
        _
    $region6: #{tconv1d_batchnorm.3} parent=1 // loop_footer
      %s16 = sadd.s32 1, %s12
    $region7: #{tconv1d_batchnorm.3} parent=1 // loop_footer_branch
      %11 = sbr.rel target = $region3
    $region8: #{tconv1d_batchnorm.3} parent=1 // loop_exit
      _
    %240 = vsyncpa [#allocation3], 1
    %s241 = scalar_lea.sflag [#allocation3], 1
    %242 = vsyncpa %s241, 1

</llo_original>
